<compile_context>
chip_gen: v7x
topology: tpu7x:2x2x1
jax: 0.10.0
libtpu: 0.0.40
codegen_flags: <defaults>
</compile_context>

<pallas_src>
import functools

import jax
import jax.numpy as jnp
from jax.experimental import pallas as pl
from jax.experimental.pallas import tpu as pltpu


# ---------------------------------------------------------------------------
# Kernels
# ---------------------------------------------------------------------------

def _mean_kernel(x_ref, o_ref, *scratch, full_s, tile_s, ragged):
    # x_ref: (bB, tS, tH)   o_ref: (bB, tH)
    # scratch: () when output dtype is f32 (accumulate in o_ref), else one
    # (bB, tH) f32 VMEM scratch.
    acc_ref = scratch[0] if scratch else o_ref
    s_idx = pl.program_id(2)
    last = pl.num_programs(2) - 1

    @pl.when(s_idx == 0)
    def _():
        acc_ref[...] = jnp.zeros_like(acc_ref)

    def accumulate(n_rows):
        # Static slice: on the ragged tail tile only valid rows are read, so
        # padded garbage never enters the sum and no mask pass is needed.
        x = x_ref[:, :n_rows, :].astype(jnp.float32)
        acc_ref[...] += jnp.sum(x, axis=1)

    if ragged:
        tail = full_s % tile_s

        @pl.when(s_idx != last)
        def _():
            accumulate(tile_s)

        @pl.when(s_idx == last)
        def _():
            accumulate(tail)
    else:
        accumulate(tile_s)

    @pl.when(s_idx == last)
    def _():
        # Divide by the *full* sequence length, not the tile length.
        o_ref[...] = (acc_ref[...] * jnp.float32(1.0 / full_s)).astype(o_ref.dtype)


def _max_kernel(x_ref, vals_ref, idx_ref, max_acc, idx_acc, *,
                full_s, tile_s, ragged):
    # x_ref: (bB, tS, tH)   vals_ref/idx_ref: (bB, tH)
    # max_acc: (bB, tH) f32 scratch   idx_acc: (bB, tH) int32 scratch
    s_idx = pl.program_id(2)
    last = pl.num_programs(2) - 1

    @pl.when(s_idx == 0)
    def _():
        max_acc[...] = jnp.full_like(max_acc, -jnp.inf)
        idx_acc[...] = jnp.zeros_like(idx_acc)

    def step(n_rows):
        # Stay in the input dtype (bf16 on v6e/v7x) — no full-tile f32 promote.
        x = x_ref[:, :n_rows, :]
        # Sublane iota, broadcast inside the where (no full-tile int32 iota).
        ids = jax.lax.broadcasted_iota(jnp.int32, (1, n_rows, 1), 1)

        local_max = jnp.max(x, axis=1)                               # (bB, tH)
        is_max = x == local_max[:, None, :]
        masked_ids = jnp.where(is_max, ids, jnp.int32(n_rows))
        local_idx = jnp.min(masked_ids, axis=1) + s_idx * tile_s     # global idx

        # Merge into running state; strict '>' keeps first-occurrence tie
        # semantics across tiles (earlier tile wins ties).
        lmax_f32 = local_max.astype(jnp.float32)
        better = lmax_f32 > max_acc[...]
        max_acc[...] = jnp.where(better, lmax_f32, max_acc[...])
        idx_acc[...] = jnp.where(better, local_idx, idx_acc[...])

    if ragged:
        tail = full_s % tile_s

        @pl.when(s_idx != last)
        def _():
            step(tile_s)

        @pl.when(s_idx == last)
        def _():
            step(tail)
    else:
        step(tile_s)

    @pl.when(s_idx == last)
    def _():
        vals_ref[...] = max_acc[...].astype(vals_ref.dtype)
        idx_ref[...] = idx_acc[...]

    # TODO(synk): NaN propagation differs from torch.max (torch returns the
    # NaN and its index); only relevant if inputs may contain NaNs.
    # TODO(synk): integer input dtypes would lose exactness through the f32
    # merge / -inf identity; restrict to floating-point inputs.


# ---------------------------------------------------------------------------
# Tile / VMEM configuration
# ---------------------------------------------------------------------------

def _tpu_vmem_capacity_bytes():
    try:
        info = pltpu.get_tpu_info()
        cap = getattr(info, "vmem_capacity_bytes", None)
        if cap:
            return int(cap)
    except Exception:
        pass
    return 128 * 1024 * 1024  # v5e / v6e default


def _vmem_config():
    cap = _tpu_vmem_capacity_bytes()
    if cap <= 64 * 1024 * 1024:
        # v7x: 64 MiB VMEM per TC — smaller per-buffer tiles, leave headroom.
        return 10 * 1024 * 1024, 48 * 1024 * 1024
    # v5e / v6e: 128 MiB physical VMEM.
    return 16 * 1024 * 1024, 96 * 1024 * 1024


def _choose_tiles(B, S, H, itemsize, target_bytes):
    # Batch block: 8 if evenly divisible (so the 2-D output block (bB, tH)
    # satisfies the (8, 128) constraint), else the full batch.
    bB = 8 if (B % 8 == 0) else B

    # Hidden (lane) block: prefer FULL H (keeps every DMA'd row contiguous);
    # for very large H pick the LARGEST 128-multiple divisor <= 2048.
    H_CAP = 2048
    if H <= H_CAP or H % 128 != 0:
        tH = H
    else:
        tH = 128
        d = H_CAP - (H_CAP % 128)
        while d >= 128:
            if H % d == 0:
                tH = d
                break
            d -= 128

    # Make sure there are >= 2 'parallel' blocks when cleanly possible so
    # v7x's two TensorCores both get work.
    if (B // bB) * (H // tH) < 2:
        if bB % 16 == 0:
            bB //= 2
        elif tH == H and H % 256 == 0:
            tH = H // 2

    # Sequence (sublane) block from the byte budget (dtype-aware). Ragged
    # tails are handled in-kernel via static slicing.
    if S % 8 != 0:
        tS = S
    else:
        budget_rows = target_bytes // max(1, bB * tH * itemsize)
        tS = min(S, max(8, (budget_rows // 8) * 8))
    return bB, tS, tH


# ---------------------------------------------------------------------------
# Wrapper
# ---------------------------------------------------------------------------

def pooling(x, method="mean", *, _tile_s=None):
    assert method in ("mean", "max", "cls")
    if method == "cls":
        # The reference module returns None for 'cls'.
        return None

    B, S, H = x.shape
    itemsize = jnp.dtype(x.dtype).itemsize
    target_bytes, vmem_limit = _vmem_config()
    bB, tS, tH = _choose_tiles(B, S, H, itemsize, target_bytes)
    if _tile_s is not None:  # test hook to force the multi-tile / ragged path
        tS = _tile_s
    grid = (B // bB, H // tH, pl.cdiv(S, tS))
    ragged = (S % tS) != 0

    in_spec = pl.BlockSpec((bB, tS, tH), lambda b, h, s: (b, s, h))
    # Output block index ignores the S axis -> accumulator pattern.
    out_spec = pl.BlockSpec((bB, tH), lambda b, h, s: (b, h))
    cparams = pltpu.CompilerParams(
        dimension_semantics=("parallel", "parallel", "arbitrary"),
        vmem_limit_bytes=vmem_limit,
    )

    in_bytes = B * S * H * itemsize

    if method == "mean":
        out_bytes = B * H * itemsize
        cost = pl.CostEstimate(flops=B * S * H, transcendentals=0,
                               bytes_accessed=in_bytes + out_bytes)
        # f32 in/out: accumulate directly into the VMEM-resident output block.
        scratch = [] if x.dtype == jnp.float32 else [pltpu.VMEM((bB, tH), jnp.float32)]
        kernel = functools.partial(
            _mean_kernel, full_s=S, tile_s=tS, ragged=ragged)
        return pl.pallas_call(
            kernel,
            grid=grid,
            in_specs=[in_spec],
            out_specs=out_spec,
            out_shape=jax.ShapeDtypeStruct((B, H), x.dtype),
            scratch_shapes=scratch,
            compiler_params=cparams,
            cost_estimate=cost,
        )(x)

    # method == "max"
    out_bytes = B * H * (itemsize + 4)
    cost = pl.CostEstimate(flops=2 * B * S * H, transcendentals=0,
                           bytes_accessed=in_bytes + out_bytes)
    kernel = functools.partial(_max_kernel, full_s=S, tile_s=tS, ragged=ragged)
    return pl.pallas_call(
        kernel,
        grid=grid,
        in_specs=[in_spec],
        out_specs=(out_spec, out_spec),
        out_shape=(
            jax.ShapeDtypeStruct((B, H), x.dtype),
            jax.ShapeDtypeStruct((B, H), jnp.int32),
        ),
        scratch_shapes=[
            pltpu.VMEM((bB, tH), jnp.float32),
            pltpu.VMEM((bB, tH), jnp.int32),
        ],
        compiler_params=cparams,
        cost_estimate=cost,
    )(x)


# ---------------------------------------------------------------------------
# Self-test
# ---------------------------------------------------------------------------

if __name__ == "__main__":
    key = jax.random.PRNGKey(0)

    # --- Small case (single block per axis, f32 no-scratch mean path) ---
    B, S, H = 2, 8, 32
    x = jax.random.normal(key, (B, S, H), dtype=jnp.float32)

    mean_out = pooling(x, method="mean")
    jax.block_until_ready(mean_out)
    assert mean_out.shape == (B, H)
    assert jnp.allclose(mean_out, jnp.mean(x, axis=1), atol=1e-5, rtol=1e-5)

    max_vals, max_idx = pooling(x, method="max")
    jax.block_until_ready(max_vals)
    jax.block_until_ready(max_idx)
    assert jnp.allclose(max_vals, jnp.max(x, axis=1), atol=1e-5, rtol=1e-5)
    assert jnp.array_equal(max_idx, jnp.argmax(x, axis=1).astype(jnp.int32))

    # cls pooling returns None per the reference module
    assert pooling(x, method="cls") is None

    # --- Moderate case exercising the multi-block / ragged-S path ---
    # Force tS=128: B=16 -> bB=8 (2 batch blocks); H=384 -> tH=384 (full H);
    # S=264 -> 3 S blocks with a ragged tail of 8 rows.
    B2, S2, H2 = 16, 264, 384
    x2 = jax.random.normal(jax.random.PRNGKey(0), (B2, S2, H2), dtype=jnp.float32)

    mean2 = pooling(x2, method="mean", _tile_s=128)
    jax.block_until_ready(mean2)
    assert jnp.allclose(mean2, jnp.mean(x2, axis=1), atol=2e-5, rtol=2e-5)

    vals2, idx2 = pooling(x2, method="max", _tile_s=128)
    jax.block_until_ready(vals2)
    jax.block_until_ready(idx2)
    assert jnp.allclose(vals2, jnp.max(x2, axis=1), atol=1e-6, rtol=1e-6)
    assert jnp.array_equal(idx2, jnp.argmax(x2, axis=1).astype(jnp.int32))

    # --- bf16 case (input-dtype max path, scratch mean path) ---
    x3 = x2.astype(jnp.bfloat16)

    mean3 = pooling(x3, method="mean", _tile_s=128)
    jax.block_until_ready(mean3)
    ref_mean3 = jnp.mean(x3.astype(jnp.float32), axis=1)
    assert jnp.allclose(mean3.astype(jnp.float32), ref_mean3, atol=1e-2, rtol=1e-2)

    vals3, idx3 = pooling(x3, method="max", _tile_s=128)
    jax.block_until_ready(vals3)
    jax.block_until_ready(idx3)
    ref_vals3 = jnp.max(x3, axis=1)
    assert jnp.array_equal(vals3, ref_vals3)
    assert bool(jnp.all((idx3 >= 0) & (idx3 < S2)))
    gathered = jnp.take_along_axis(x3, idx3[:, None, :], axis=1)[:, 0, :]
    assert jnp.array_equal(gathered, ref_vals3)  # indices point at a max value

    print("KERNEL_OK")
</pallas_src>

<mosaic_0001>
module attributes {stable_mosaic.version = 11 : i64} {
  func.func @_mean_kernel(%arg0: i32, %arg1: i32, %arg2: i32, %arg3: memref<2x8x32xf32, #tpu.memory_space<vmem>>, %arg4: memref<2x32xf32, #tpu.memory_space<vmem>>) attributes {dimension_semantics = [#tpu.dimension_semantics<parallel>, #tpu.dimension_semantics<parallel>, #tpu.dimension_semantics<arbitrary>], iteration_bounds = array<i64: 1, 1, 1>, scalar_prefetch = 0 : i64, scratch_operands = 0 : i64, tpu.core_type = #tpu.core_type<tc>, window_params = [{transform_indices = @transform_0, window_bounds = array<i64: 2, 8, 32>}, {transform_indices = @transform_1, window_bounds = array<i64: 2, 32>}]} {
    %c0_i32 = arith.constant 0 : i32
    %0 = arith.cmpi eq, %arg2, %c0_i32 : i32
    %1 = arith.extui %0 : i1 to i32
    %c0_i32_0 = arith.constant 0 : i32
    %2 = arith.cmpi ne, %1, %c0_i32_0 : i32
    scf.if %2 {
      %cst_9 = arith.constant 0.000000e+00 : f32
      %11 = vector.broadcast %cst_9 : f32 to vector<2x32xf32>
      %c0_10 = arith.constant 0 : index
      %c0_11 = arith.constant 0 : index
      %12 = vector.load %arg4[%c0_10, %c0_11] : memref<2x32xf32, #tpu.memory_space<vmem>>, vector<2x32xf32>
      tpu.vector_store %arg4[%c0_10, %c0_11], %11 {strides = array<i32>} : memref<2x32xf32, #tpu.memory_space<vmem>>, vector<2x32xf32>,
    } else {
    }
    %c0 = arith.constant 0 : index
    %c0_1 = arith.constant 0 : index
    %c0_2 = arith.constant 0 : index
    %3 = vector.load %arg3[%c0, %c0_1, %c0_2] : memref<2x8x32xf32, #tpu.memory_space<vmem>>, vector<2x8x32xf32>
    %c0_3 = arith.constant 0 : index
    %c0_4 = arith.constant 0 : index
    %4 = vector.load %arg4[%c0_3, %c0_4] : memref<2x32xf32, #tpu.memory_space<vmem>>, vector<2x32xf32>
    %cst = arith.constant dense<0.000000e+00> : vector<2x32xf32>
    %5 = vector.multi_reduction <add>, %3, %cst [1] : vector<2x8x32xf32> to vector<2x32xf32>
    %6 = arith.addf %4, %5 : vector<2x32xf32>
    %c0_5 = arith.constant 0 : index
    %c0_6 = arith.constant 0 : index
    %7 = vector.load %arg4[%c0_5, %c0_6] : memref<2x32xf32, #tpu.memory_space<vmem>>, vector<2x32xf32>
    tpu.vector_store %arg4[%c0_5, %c0_6], %6 {strides = array<i32>} : memref<2x32xf32, #tpu.memory_space<vmem>>, vector<2x32xf32>,
    %c0_i32_7 = arith.constant 0 : i32
    %8 = arith.cmpi eq, %arg2, %c0_i32_7 : i32
    %9 = arith.extui %8 : i1 to i32
    %c0_i32_8 = arith.constant 0 : i32
    %10 = arith.cmpi ne, %9, %c0_i32_8 : i32
    scf.if %10 {
      %c0_9 = arith.constant 0 : index
      %c0_10 = arith.constant 0 : index
      %11 = vector.load %arg4[%c0_9, %c0_10] : memref<2x32xf32, #tpu.memory_space<vmem>>, vector<2x32xf32>
      %cst_11 = arith.constant 1.250000e-01 : f32
      %12 = vector.broadcast %cst_11 : f32 to vector<2x32xf32>
      %13 = arith.mulf %11, %12 : vector<2x32xf32>
      %c0_12 = arith.constant 0 : index
      %c0_13 = arith.constant 0 : index
      %14 = vector.load %arg4[%c0_12, %c0_13] : memref<2x32xf32, #tpu.memory_space<vmem>>, vector<2x32xf32>
      tpu.vector_store %arg4[%c0_12, %c0_13], %13 {strides = array<i32>} : memref<2x32xf32, #tpu.memory_space<vmem>>, vector<2x32xf32>,
    } else {
    }
    return
  }
  func.func @transform_0(%arg0: i32, %arg1: i32, %arg2: i32) -> (i32, i32, i32) {
    %c0_i32 = arith.constant 0 : i32
    return %arg0, %arg2, %arg1 : i32, i32, i32
  }
  func.func @transform_1(%arg0: i32, %arg1: i32, %arg2: i32) -> (i32, i32) {
    %c0_i32 = arith.constant 0 : i32
    return %arg0, %arg1 : i32, i32
  }
}

</mosaic_0001>

<llo_original>
// kernel: tpu_custom_call.1
$region0: #{tpu_custom_call.1}
  #allocation0 [shape = 'u32[]', space=smem, size = 0x4, offset = 0x4, fixed_abs, tag = 'smem constant byte address 0x4 - core index']
  #allocation1 [shape = 'u32[144,128]{1,0:T(1,128)}', space=vmem, size = 0x12000, scoped, tag = 'internal scratch']
  %s0 = inlined_call_operand.hbm [shape: f32[2,8,32], index: 0, kind: input, shape index: {}]
  %s1 = inlined_call_operand.hbm [shape: f32[2,32], index: 1, kind: output, shape index: {}]
  %s2 = sld [smem:[#allocation0]]
  $region26: #{tpu_custom_call.1} parent=0
    _
  %s4 = ssub.s32 1, %s2
  %s5 = scalar_select 0, %s4, %s2
  $region1: #{tpu_custom_call.1} parent=0
    #allocation2 [shape = 'u8[8192]{0}', space=vmem, size = 0x2000, scoped, tag = 'input window, operand 0, single buffered']
    #allocation3 [shape = 's32[1]{0}', space=sflag, size = 0x4, scoped, tag = 'scoped memory for tpu_custom_call.1']
    #allocation4 [shape = 's32[1]{0}', space=sflag, size = 0x4, scoped, tag = 'scoped memory for tpu_custom_call.1']
    #allocation5 [shape = 'u8[1024]{0}', space=vmem, size = 0x400, scoped, tag = 'output window, operand 0, single buffered']
    %6 = vsyncpa [#allocation3], 0
    %7 = vsyncpa [#allocation4], 0
    // Predicated region
    $region2: #{tpu_custom_call.1} parent=1 // pred_check
      _
    $region3: #{tpu_custom_call.1} parent=1 // pred_check_branch
      %9 = sbr.rel (0) target = $region5
    $region4: #{tpu_custom_call.1} parent=1 // pred_region
      %s11 = ssub.s32 256, 256
      %12 = vsyncadd [#allocation3], %s11
      %s13 = sshll.u32 [#allocation2], 4
      %s14 = int_to_ptr.vmem [resolvable:$true] %s13
      %19 = dma.hbm_to_vmem [thread:$0]  %s0, 256, %s14, [#allocation3], 128, 128, 8
    $region5: #{tpu_custom_call.1} parent=1 // pred_fallthru
      _
    // Predicated region
    $region6: #{tpu_custom_call.1} parent=1 // pred_check
      _
    $region7: #{tpu_custom_call.1} parent=1 // pred_check_branch
      %21 = sbr.rel (0) target = $region9
    $region8: #{tpu_custom_call.1} parent=1 // pred_region
      %22 = dma.done [#allocation3], 256
    $region9: #{tpu_custom_call.1} parent=1 // pred_fallthru
      _
    %p23 = scmp.eq.s32.totalorder 0, 0
    // Predicated region
    $region10: #{tpu_custom_call.1} parent=1 // pred_check
      %p24 = pneg %p23
    $region11: #{tpu_custom_call.1} parent=1 // pred_check_branch
      %26 = sbr.rel (%p24) target = $region13
    $region12: #{tpu_custom_call.1} parent=1 // pred_region
      %vm27 = vcmask 254976
      %28 = vst.msk [vmem:[#allocation5] sm:$0x3] %vm27, 0.0
    $region13: #{tpu_custom_call.1} parent=1 // pred_fallthru
      _
    %v29 = vld [vmem:[#allocation2] sm:$0xff]
    %v30 = vld [vmem:[#allocation2 + $0x8] sm:$0xff]
    %v31 = vld [vmem:[#allocation5] sm:$0x3]
    %vm32 = vcmask 261120
    %v33 = vsel %vm32, %v29, 0.0
    %v34 = vrot.slane %v33, 4
    %v35 = vadd.f32 %v33, %v34
    %v36 = vrot.slane %v35, 2
    %v37 = vadd.f32 %v35, %v36
    %v38 = vrot.slane %v37, 1
    %v39 = vadd.f32 %v37, %v38
    %v40 = vsel %vm32, %v30, 0.0
    %v41 = vrot.slane %v40, 4
    %v42 = vadd.f32 %v40, %v41
    %v43 = vrot.slane %v42, 2
    %v44 = vadd.f32 %v42, %v43
    %v45 = vrot.slane %v44, 1
    %v46 = vadd.f32 %v44, %v45
    %vm49 = vcmask 1041409
    %v50 = vsel %vm49, %v46, %v39
    %v52 = vadd.f32 %v31, %v50
    %vm53 = vcmask 254976
    %54 = vst.msk [vmem:[#allocation5] sm:$0x3] %vm53, %v52
    // Predicated region
    $region14: #{tpu_custom_call.1} parent=1 // pred_check
      %p55 = pneg %p23
    $region15: #{tpu_custom_call.1} parent=1 // pred_check_branch
      %57 = sbr.rel (%p55) target = $region17
    $region16: #{tpu_custom_call.1} parent=1 // pred_region
      %v58 = vld [vmem:[#allocation5] sm:$0x3]
      %v59 = vmul.f32 %v58, 0.125
      %60 = vst.msk [vmem:[#allocation5] sm:$0x3] %vm53, %v59
    $region17: #{tpu_custom_call.1} parent=1 // pred_fallthru
      _
    // Predicated region
    $region18: #{tpu_custom_call.1} parent=1 // pred_check
      _
    $region19: #{tpu_custom_call.1} parent=1 // pred_check_branch
      %62 = sbr.rel (0) target = $region21
    $region20: #{tpu_custom_call.1} parent=1 // pred_region
      %s64 = ssub.s32 32, 32
      %65 = vsyncadd [#allocation4], %s64
      %s67 = sshll.u32 [#allocation5], 4
      %s68 = int_to_ptr.vmem [resolvable:$true] %s67
      %70 = dma.vmem_to_hbm [thread:$0]  %s68, 32, %s1, [#allocation4]
    $region21: #{tpu_custom_call.1} parent=1 // pred_fallthru
      _
    // Predicated region
    $region22: #{tpu_custom_call.1} parent=1 // pred_check
      _
    $region23: #{tpu_custom_call.1} parent=1 // pred_check_branch
      %72 = sbr.rel (0) target = $region25
    $region24: #{tpu_custom_call.1} parent=1 // pred_region
      %73 = dma.done [#allocation4], 32
    $region25: #{tpu_custom_call.1} parent=1 // pred_fallthru
      _
    %74 = vsyncpa [#allocation3], 1
    %75 = vsyncpa [#allocation4], 1

</llo_original>
